<compile_context>
chip_gen: v5e
topology: v5e:2x2
jax: 0.10.0
libtpu: 0.0.40
codegen_flags: <defaults>
</compile_context>

<pallas_src>
import functools

import jax
import jax.numpy as jnp
from jax.experimental import pallas as pl
from jax.experimental.pallas import tpu as pltpu


def _tile(total, target, align):
    """Largest multiple of `align` <= target that divides `total`; else the full extent."""
    if total % align != 0:
        return total
    t = min(target, total)
    t = (t // align) * align
    while t > 0 and total % t != 0:
        t -= align
    return t if t > 0 else total


# ----------------------- Pass 1: squeeze + excitation -----------------------

def _se_pool_mlp_kernel(x_ref, w1_ref, w2_ref, g_ref, acc_ref, *, inv_hw):
    # x_ref: (t_b, C, t_hw) spatial tile; acc_ref / g_ref: (t_b, C).
    j = pl.program_id(1)

    @pl.when(j == 0)
    def _():
        acc_ref[...] = jnp.zeros_like(acc_ref)

    acc_ref[...] += jnp.sum(x_ref[...], axis=-1)  # partial spatial sum -> (t_b, C)

    @pl.when(j == pl.num_programs(1) - 1)
    def _():
        mean = acc_ref[...] * inv_hw                                          # (t_b, C)
        h = jnp.maximum(
            jnp.dot(mean, w1_ref[...], preferred_element_type=jnp.float32), 0.0)
        z = jnp.dot(h, w2_ref[...], preferred_element_type=jnp.float32)      # (t_b, C)
        g_ref[...] = 1.0 / (1.0 + jnp.exp(-z))                               # sigmoid


def _se_gates(x3, w1, w2):
    B, C, HW = x3.shape
    Cr = w1.shape[1]

    # Batch tile: must be a multiple of 8 (sublane) or the full extent.
    t_b = 8 if (B % 8 == 0) else B
    # Spatial tile: lane-aligned, capped so the x block stays ~<= 8 MiB.
    budget_elems = (8 << 20) // 4
    tgt_hw = max(128, min(2048, budget_elems // max(1, t_b * C)))
    t_hw = _tile(HW, tgt_hw, 128)

    grid = (B // t_b, HW // t_hw)
    return pl.pallas_call(
        functools.partial(_se_pool_mlp_kernel, inv_hw=1.0 / HW),
        out_shape=jax.ShapeDtypeStruct((B, C), jnp.float32),
        grid=grid,
        in_specs=[
            pl.BlockSpec((t_b, C, t_hw), lambda i, j: (i, 0, j)),
            pl.BlockSpec((C, Cr), lambda i, j: (0, 0)),
            pl.BlockSpec((Cr, C), lambda i, j: (0, 0)),
        ],
        out_specs=pl.BlockSpec((t_b, C), lambda i, j: (i, 0)),
        scratch_shapes=[pltpu.VMEM((t_b, C), jnp.float32)],
        compiler_params=pltpu.CompilerParams(
            dimension_semantics=("parallel", "arbitrary"),
            vmem_limit_bytes=64 << 20,
        ),
        cost_estimate=pl.CostEstimate(
            flops=B * C * HW + 4 * B * C * Cr,
            transcendentals=B * C,
            bytes_accessed=4 * (B * C * HW + 2 * C * Cr + B * C),
        ),
    )(x3, w1, w2)


# --------------------------- Pass 2: re-scale x ------------------------------

def _se_scale_kernel(x_ref, g_ref, o_ref):
    # x_ref: (t_r, t_hw) rows of (b, c) x spatial; g_ref: (t_r, 1) per-row gate.
    o_ref[...] = x_ref[...] * g_ref[...]


def _se_scale(x2, gates2):
    R, HW = x2.shape
    t_r = _tile(R, 256, 8)
    t_hw = _tile(HW, 2048, 128)
    return pl.pallas_call(
        _se_scale_kernel,
        out_shape=jax.ShapeDtypeStruct((R, HW), x2.dtype),
        grid=(R // t_r, HW // t_hw),
        in_specs=[
            pl.BlockSpec((t_r, t_hw), lambda i, j: (i, j)),
            pl.BlockSpec((t_r, 1), lambda i, j: (i, 0)),
        ],
        out_specs=pl.BlockSpec((t_r, t_hw), lambda i, j: (i, j)),
        compiler_params=pltpu.CompilerParams(
            dimension_semantics=("parallel", "parallel"),
            vmem_limit_bytes=64 << 20,
        ),
        cost_estimate=pl.CostEstimate(
            flops=R * HW,
            transcendentals=0,
            bytes_accessed=4 * (2 * R * HW + R),
        ),
    )(x2, gates2)


# ------------------------------- forward ------------------------------------

@jax.jit
def se_block_2d(x, w1, w2):
    """x: (B, C, H, W) f32; w1: (C, C//r); w2: (C//r, C). Returns (B, C, H, W)."""
    B, C, H, W = x.shape
    HW = H * W
    gates = _se_gates(x.reshape(B, C, HW), w1, w2)           # (B, C)
    out2 = _se_scale(x.reshape(B * C, HW), gates.reshape(B * C, 1))
    return out2.reshape(B, C, H, W)


def se_block_2d_ref(x, w1, w2):
    y = jnp.mean(x, axis=(2, 3))
    y = jnp.maximum(y @ w1, 0.0)
    y = jax.nn.sigmoid(y @ w2)
    return x * y[:, :, None, None]


# --------------------------------- main --------------------------------------

if __name__ == "__main__":
    key = jax.random.PRNGKey(0)
    kx, k1, k2 = jax.random.split(key, 3)

    B, C, H, W = 2, 64, 16, 16
    reduction = 16
    Cr = C // reduction

    x = jax.random.normal(kx, (B, C, H, W), jnp.float32)
    # nn.Linear(C, C//r, bias=False).weight is (C//r, C); store transposed for y @ W^T.
    w1 = jax.random.normal(k1, (C, Cr), jnp.float32) * (1.0 / jnp.sqrt(C))
    w2 = jax.random.normal(k2, (Cr, C), jnp.float32) * (1.0 / jnp.sqrt(Cr))

    out = se_block_2d(x, w1, w2)
    out = jax.block_until_ready(out)

    ref = se_block_2d_ref(x, w1, w2)
    assert out.shape == (B, C, H, W), out.shape
    assert bool(jnp.all(jnp.isfinite(out)))
    assert bool(jnp.allclose(out, ref, rtol=1e-5, atol=1e-5)), float(
        jnp.max(jnp.abs(out - ref)))
    print("KERNEL_OK")
</pallas_src>

<mosaic_0001>
module attributes {stable_mosaic.version = 11 : i64} {
  func.func @_se_pool_mlp_kernel(%arg0: i32, %arg1: i32, %arg2: memref<2x64x256xf32, #tpu.memory_space<vmem>>, %arg3: memref<64x4xf32, #tpu.memory_space<vmem>>, %arg4: memref<4x64xf32, #tpu.memory_space<vmem>>, %arg5: memref<2x64xf32, #tpu.memory_space<vmem>>, %arg6: memref<2x64xf32, #tpu.memory_space<vmem>>) attributes {dimension_semantics = [#tpu.dimension_semantics<parallel>, #tpu.dimension_semantics<arbitrary>], iteration_bounds = array<i64: 1, 1>, scalar_prefetch = 0 : i64, scratch_operands = 1 : i64, tpu.core_type = #tpu.core_type<tc>, window_params = [{transform_indices = @transform_0, window_bounds = array<i64: 2, 64, 256>}, {pipeline_mode = #tpu.pipeline_mode<synchronous>, transform_indices = @transform_1, window_bounds = array<i64: 64, 4>}, {pipeline_mode = #tpu.pipeline_mode<synchronous>, transform_indices = @transform_2, window_bounds = array<i64: 4, 64>}, {transform_indices = @transform_3, window_bounds = array<i64: 2, 64>}]} {
    %c0_i32 = arith.constant 0 : i32
    %0 = arith.cmpi eq, %arg1, %c0_i32 : i32
    %1 = arith.extui %0 : i1 to i32
    %c0_i32_0 = arith.constant 0 : i32
    %2 = arith.cmpi ne, %1, %c0_i32_0 : i32
    scf.if %2 {
      %cst_9 = arith.constant 0.000000e+00 : f32
      %11 = vector.broadcast %cst_9 : f32 to vector<2x64xf32>
      %c0_10 = arith.constant 0 : index
      %c0_11 = arith.constant 0 : index
      %12 = vector.load %arg6[%c0_10, %c0_11] : memref<2x64xf32, #tpu.memory_space<vmem>>, vector<2x64xf32>
      tpu.vector_store %arg6[%c0_10, %c0_11], %11 {strides = array<i32>} : memref<2x64xf32, #tpu.memory_space<vmem>>, vector<2x64xf32>,
    } else {
    }
    %c0 = arith.constant 0 : index
    %c0_1 = arith.constant 0 : index
    %3 = vector.load %arg6[%c0, %c0_1] : memref<2x64xf32, #tpu.memory_space<vmem>>, vector<2x64xf32>
    %c0_2 = arith.constant 0 : index
    %c0_3 = arith.constant 0 : index
    %c0_4 = arith.constant 0 : index
    %4 = vector.load %arg2[%c0_2, %c0_3, %c0_4] : memref<2x64x256xf32, #tpu.memory_space<vmem>>, vector<2x64x256xf32>
    %cst = arith.constant dense<0.000000e+00> : vector<2x64xf32>
    %5 = vector.multi_reduction <add>, %4, %cst [2] : vector<2x64x256xf32> to vector<2x64xf32>
    %6 = arith.addf %3, %5 : vector<2x64xf32>
    %c0_5 = arith.constant 0 : index
    %c0_6 = arith.constant 0 : index
    %7 = vector.load %arg6[%c0_5, %c0_6] : memref<2x64xf32, #tpu.memory_space<vmem>>, vector<2x64xf32>
    tpu.vector_store %arg6[%c0_5, %c0_6], %6 {strides = array<i32>} : memref<2x64xf32, #tpu.memory_space<vmem>>, vector<2x64xf32>,
    %c0_i32_7 = arith.constant 0 : i32
    %8 = arith.cmpi eq, %arg1, %c0_i32_7 : i32
    %9 = arith.extui %8 : i1 to i32
    %c0_i32_8 = arith.constant 0 : i32
    %10 = arith.cmpi ne, %9, %c0_i32_8 : i32
    scf.if %10 {
      %c0_9 = arith.constant 0 : index
      %c0_10 = arith.constant 0 : index
      %11 = vector.load %arg6[%c0_9, %c0_10] : memref<2x64xf32, #tpu.memory_space<vmem>>, vector<2x64xf32>
      %cst_11 = arith.constant 3.906250e-03 : f32
      %12 = vector.broadcast %cst_11 : f32 to vector<2x64xf32>
      %13 = arith.mulf %11, %12 : vector<2x64xf32>
      %c0_12 = arith.constant 0 : index
      %c0_13 = arith.constant 0 : index
      %14 = vector.load %arg3[%c0_12, %c0_13] : memref<64x4xf32, #tpu.memory_space<vmem>>, vector<64x4xf32>
      %cst_14 = arith.constant dense<0.000000e+00> : vector<2x4xf32>
      %15 = tpu.matmul %13, %14, %cst_14 {dimension_numbers = #tpu.dot_dimension_numbers<[1], [0], [0], [1], [0, 0, 1, 1], [], []>} : vector<2x64xf32>, vector<64x4xf32>, vector<2x4xf32> -> vector<2x4xf32>
      %cst_15 = arith.constant 0.000000e+00 : f32
      %16 = vector.broadcast %cst_15 : f32 to vector<2x4xf32>
      %17 = arith.maximumf %15, %16 : vector<2x4xf32>
      %c0_16 = arith.constant 0 : index
      %c0_17 = arith.constant 0 : index
      %18 = vector.load %arg4[%c0_16, %c0_17] : memref<4x64xf32, #tpu.memory_space<vmem>>, vector<4x64xf32>
      %cst_18 = arith.constant dense<0.000000e+00> : vector<2x64xf32>
      %19 = tpu.matmul %17, %18, %cst_18 {dimension_numbers = #tpu.dot_dimension_numbers<[1], [0], [0], [1], [0, 0, 1, 1], [], []>} : vector<2x4xf32>, vector<4x64xf32>, vector<2x64xf32> -> vector<2x64xf32>
      %cst_19 = arith.constant 0.000000e+00 : f32
      %20 = vector.broadcast %cst_19 : f32 to vector<2x64xf32>
      %21 = arith.subf %20, %19 : vector<2x64xf32>
      %22 = math.exp %21 : vector<2x64xf32>
      %cst_20 = arith.constant 1.000000e+00 : f32
      %23 = vector.broadcast %cst_20 : f32 to vector<2x64xf32>
      %24 = arith.addf %23, %22 : vector<2x64xf32>
      %cst_21 = arith.constant 1.000000e+00 : f32
      %25 = vector.broadcast %cst_21 : f32 to vector<2x64xf32>
      %26 = arith.divf %25, %24 : vector<2x64xf32>
      %c0_22 = arith.constant 0 : index
      %c0_23 = arith.constant 0 : index
      %27 = vector.load %arg5[%c0_22, %c0_23] : memref<2x64xf32, #tpu.memory_space<vmem>>, vector<2x64xf32>
      tpu.vector_store %arg5[%c0_22, %c0_23], %26 {strides = array<i32>} : memref<2x64xf32, #tpu.memory_space<vmem>>, vector<2x64xf32>,
    } else {
    }
    return
  }
  func.func @transform_0(%arg0: i32, %arg1: i32) -> (i32, i32, i32) {
    %c0_i32 = arith.constant 0 : i32
    %c0_i32_0 = arith.constant 0 : i32
    return %arg0, %c0_i32, %arg1 : i32, i32, i32
  }
  func.func @transform_1(%arg0: i32, %arg1: i32) -> (i32, i32) {
    %c0_i32 = arith.constant 0 : i32
    %c0_i32_0 = arith.constant 0 : i32
    %c0_i32_1 = arith.constant 0 : i32
    return %c0_i32, %c0_i32_0 : i32, i32
  }
  func.func @transform_2(%arg0: i32, %arg1: i32) -> (i32, i32) {
    %c0_i32 = arith.constant 0 : i32
    %c0_i32_0 = arith.constant 0 : i32
    %c0_i32_1 = arith.constant 0 : i32
    return %c0_i32, %c0_i32_0 : i32, i32
  }
  func.func @transform_3(%arg0: i32, %arg1: i32) -> (i32, i32) {
    %c0_i32 = arith.constant 0 : i32
    %c0_i32_0 = arith.constant 0 : i32
    return %arg0, %c0_i32 : i32, i32
  }
}

module attributes {stable_mosaic.version = 11 : i64} {
  func.func @_se_scale_kernel(%arg0: i32, %arg1: i32, %arg2: memref<128x256xf32, #tpu.memory_space<vmem>>, %arg3: memref<128x1xf32, #tpu.memory_space<vmem>>, %arg4: memref<128x256xf32, #tpu.memory_space<vmem>>) attributes {dimension_semantics = [#tpu.dimension_semantics<parallel>, #tpu.dimension_semantics<parallel>], iteration_bounds = array<i64: 1, 1>, scalar_prefetch = 0 : i64, scratch_operands = 0 : i64, tpu.core_type = #tpu.core_type<tc>, window_params = [{transform_indices = @transform_0, window_bounds = array<i64: 128, 256>}, {transform_indices = @transform_1, window_bounds = array<i64: 128, 1>}, {transform_indices = @transform_2, window_bounds = array<i64: 128, 256>}]} {
    %c0 = arith.constant 0 : index
    %c0_0 = arith.constant 0 : index
    %0 = vector.load %arg2[%c0, %c0_0] : memref<128x256xf32, #tpu.memory_space<vmem>>, vector<128x256xf32>
    %c0_1 = arith.constant 0 : index
    %c0_2 = arith.constant 0 : index
    %1 = vector.load %arg3[%c0_1, %c0_2] : memref<128x1xf32, #tpu.memory_space<vmem>>, vector<128x1xf32>
    %2 = vector.broadcast %1 : vector<128x1xf32> to vector<128x256xf32>
    %3 = arith.mulf %0, %2 : vector<128x256xf32>
    %c0_3 = arith.constant 0 : index
    %c0_4 = arith.constant 0 : index
    %4 = vector.load %arg4[%c0_3, %c0_4] : memref<128x256xf32, #tpu.memory_space<vmem>>, vector<128x256xf32>
    tpu.vector_store %arg4[%c0_3, %c0_4], %3 {strides = array<i32>} : memref<128x256xf32, #tpu.memory_space<vmem>>, vector<128x256xf32>,
    return
  }
  func.func @transform_0(%arg0: i32, %arg1: i32) -> (i32, i32) {
    %c0_i32 = arith.constant 0 : i32
    return %arg0, %arg1 : i32, i32
  }
  func.func @transform_1(%arg0: i32, %arg1: i32) -> (i32, i32) {
    %c0_i32 = arith.constant 0 : i32
    %c0_i32_0 = arith.constant 0 : i32
    return %arg0, %c0_i32 : i32, i32
  }
  func.func @transform_2(%arg0: i32, %arg1: i32) -> (i32, i32) {
    %c0_i32 = arith.constant 0 : i32
    return %arg0, %arg1 : i32, i32
  }
}

</mosaic_0001>

<llo_original>
// kernel: se_block_2d.2
$region0: #{se_block_2d.2}
  #allocation0 [shape = 'u32[]', space=smem, size = 0x4, offset = 0x4, fixed_abs, tag = 'smem constant byte address 0x4 - core index']
  #allocation1 [shape = 'u32[72,128]{1,0:T(1,128)}', space=vmem, size = 0x9000, scoped, tag = 'internal scratch']
  #allocation2 [shape = 'f32[2,64]{1,0:T(2,128)}', space=vmem, size = 0x400, scoped, tag = 'scratch operand']
  %s0 = inlined_call_operand.vmem [shape: f32[2,64,256], index: 0, kind: input, shape index: {}]
  %s1 = inlined_call_operand.vmem [shape: f32[64,4], index: 1, kind: input, shape index: {}]
  %s2 = inlined_call_operand.vmem [shape: f32[4,64], index: 2, kind: input, shape index: {}]
  %s3 = inlined_call_operand.vmem [shape: f32[2,64], index: 3, kind: output, shape index: {}]
  %s4 = sld [smem:[#allocation0]]
  $region30: #{se_block_2d.2} parent=0
    _
  %s6 = ssub.s32 1, %s4
  %s7 = scalar_select 0, %s6, %s4
  // Predicated region
  $region2: #{se_block_2d.2} parent=0 // pred_check
    _
  $region3: #{se_block_2d.2} parent=0 // pred_check_branch
    %9 = sbr.rel (0) target = $region5
  $region4: #{se_block_2d.2} parent=0 // pred_region
    _
  $region5: #{se_block_2d.2} parent=0 // pred_fallthru
    _
  // Predicated region
  $region6: #{se_block_2d.2} parent=0 // pred_check
    _
  $region7: #{se_block_2d.2} parent=0 // pred_check_branch
    %11 = sbr.rel (0) target = $region9
  $region8: #{se_block_2d.2} parent=0 // pred_region
    _
  $region9: #{se_block_2d.2} parent=0 // pred_fallthru
    _
  // Predicated region
  $region10: #{se_block_2d.2} parent=0 // pred_check
    _
  $region11: #{se_block_2d.2} parent=0 // pred_check_branch
    %13 = sbr.rel (0) target = $region13
  $region12: #{se_block_2d.2} parent=0 // pred_region
    _
  $region13: #{se_block_2d.2} parent=0 // pred_fallthru
    _
  %p14 = scmp.eq.s32.totalorder 0, 0
  // Predicated region
  $region14: #{se_block_2d.2} parent=0 // pred_check
    %p15 = pneg %p14
  $region15: #{se_block_2d.2} parent=0 // pred_check_branch
    %17 = sbr.rel (%p15) target = $region17
  $region16: #{se_block_2d.2} parent=0 // pred_region
    %vm18 = vcmask 517120
    %19 = vst.msk [vmem:[#allocation2] sm:$0x3] %vm18, 0.0
  $region17: #{se_block_2d.2} parent=0 // pred_fallthru
    _
  %v20 = vld [vmem:[#allocation2] sm:$0x3]
  %v21 = vld [vmem:[%s0] sm:$0xff]
  %v22 = vld [vmem:[%s0 + $0x8] sm:$0xff]
  %v23 = vld [vmem:[%s0 + $0x10] sm:$0xff]
  %v24 = vld [vmem:[%s0 + $0x18] sm:$0xff]
  %v25 = vld [vmem:[%s0 + $0x20] sm:$0xff]
  %v26 = vld [vmem:[%s0 + $0x28] sm:$0xff]
  %v27 = vld [vmem:[%s0 + $0x30] sm:$0xff]
  %v28 = vld [vmem:[%s0 + $0x38] sm:$0xff]
  %v29 = vld [vmem:[%s0 + $0x40] sm:$0xff]
  %v30 = vld [vmem:[%s0 + $0x48] sm:$0xff]
  %v31 = vld [vmem:[%s0 + $0x50] sm:$0xff]
  %v32 = vld [vmem:[%s0 + $0x58] sm:$0xff]
  %v33 = vld [vmem:[%s0 + $0x60] sm:$0xff]
  %v34 = vld [vmem:[%s0 + $0x68] sm:$0xff]
  %v35 = vld [vmem:[%s0 + $0x70] sm:$0xff]
  %v36 = vld [vmem:[%s0 + $0x78] sm:$0xff]
  %v37 = vld [vmem:[%s0 + $0x80] sm:$0xff]
  %v38 = vld [vmem:[%s0 + $0x88] sm:$0xff]
  %v39 = vld [vmem:[%s0 + $0x90] sm:$0xff]
  %v40 = vld [vmem:[%s0 + $0x98] sm:$0xff]
  %v41 = vld [vmem:[%s0 + $0xa0] sm:$0xff]
  %v42 = vld [vmem:[%s0 + $0xa8] sm:$0xff]
  %v43 = vld [vmem:[%s0 + $0xb0] sm:$0xff]
  %v44 = vld [vmem:[%s0 + $0xb8] sm:$0xff]
  %v45 = vld [vmem:[%s0 + $0xc0] sm:$0xff]
  %v46 = vld [vmem:[%s0 + $0xc8] sm:$0xff]
  %v47 = vld [vmem:[%s0 + $0xd0] sm:$0xff]
  %v48 = vld [vmem:[%s0 + $0xd8] sm:$0xff]
  %v49 = vld [vmem:[%s0 + $0xe0] sm:$0xff]
  %v50 = vld [vmem:[%s0 + $0xe8] sm:$0xff]
  %v51 = vld [vmem:[%s0 + $0xf0] sm:$0xff]
  %v52 = vld [vmem:[%s0 + $0xf8] sm:$0xff]
  %v53 = vadd.f32 %v21, %v22
  %54 = vadd.xlane.f32.xlu0 %v53
  %v55 = vpop.xlane.xlu0 %54
  %v56 = vadd.f32 %v23, %v24
  %57 = vadd.xlane.f32.xlu0 %v56
  %v58 = vpop.xlane.xlu0 %57
  %v59 = vadd.f32 %v25, %v26
  %60 = vadd.xlane.f32.xlu0 %v59
  %v61 = vpop.xlane.xlu0 %60
  %v62 = vadd.f32 %v27, %v28
  %63 = vadd.xlane.f32.xlu0 %v62
  %v64 = vpop.xlane.xlu0 %63
  %v65 = vadd.f32 %v29, %v30
  %66 = vadd.xlane.f32.xlu0 %v65
  %v67 = vpop.xlane.xlu0 %66
  %v68 = vadd.f32 %v31, %v32
  %69 = vadd.xlane.f32.xlu0 %v68
  %v70 = vpop.xlane.xlu0 %69
  %v71 = vadd.f32 %v33, %v34
  %72 = vadd.xlane.f32.xlu0 %v71
  %v73 = vpop.xlane.xlu0 %72
  %v74 = vadd.f32 %v35, %v36
  %75 = vadd.xlane.f32.xlu0 %v74
  %v76 = vpop.xlane.xlu0 %75
  %v77 = vadd.f32 %v37, %v38
  %78 = vadd.xlane.f32.xlu0 %v77
  %v79 = vpop.xlane.xlu0 %78
  %v80 = vadd.f32 %v39, %v40
  %81 = vadd.xlane.f32.xlu0 %v80
  %v82 = vpop.xlane.xlu0 %81
  %v83 = vadd.f32 %v41, %v42
  %84 = vadd.xlane.f32.xlu0 %v83
  %v85 = vpop.xlane.xlu0 %84
  %v86 = vadd.f32 %v43, %v44
  %87 = vadd.xlane.f32.xlu0 %v86
  %v88 = vpop.xlane.xlu0 %87
  %v89 = vadd.f32 %v45, %v46
  %90 = vadd.xlane.f32.xlu0 %v89
  %v91 = vpop.xlane.xlu0 %90
  %v92 = vadd.f32 %v47, %v48
  %93 = vadd.xlane.f32.xlu0 %v92
  %v94 = vpop.xlane.xlu0 %93
  %v95 = vadd.f32 %v49, %v50
  %96 = vadd.xlane.f32.xlu0 %v95
  %v97 = vpop.xlane.xlu0 %96
  %v98 = vadd.f32 %v51, %v52
  %99 = vadd.xlane.f32.xlu0 %v98
  %v100 = vpop.xlane.xlu0 %99
  %v117 = vlaneseq
  %v118 = vand.u32 %v117, 127
  %v119 = vperm.slane %v55, %v118
  %v120 = vadd.s32 %v118, 4294967288
  %v121 = vperm.slane %v58, %v120
  %vm122 = vcmask 130112
  %v123 = vsel %vm122, %v121, %v119
  %v124 = vadd.s32 %v118, 4294967280
  %v125 = vperm.slane %v61, %v124
  %vm126 = vcmask 195712
  %v127 = vsel %vm126, %v125, %v123
  %v128 = vadd.s32 %v118, 4294967272
  %v129 = vperm.slane %v64, %v128
  %vm130 = vcmask 261312
  %v131 = vsel %vm130, %v129, %v127
  %v132 = vadd.s32 %v118, 4294967264
  %v133 = vperm.slane %v67, %v132
  %vm134 = vcmask 326912
  %v135 = vsel %vm134, %v133, %v131
  %v136 = vadd.s32 %v118, 4294967256
  %v137 = vperm.slane %v70, %v136
  %vm138 = vcmask 392512
  %v139 = vsel %vm138, %v137, %v135
  %v140 = vadd.s32 %v118, 4294967248
  %v141 = vperm.slane %v73, %v140
  %vm142 = vcmask 458112
  %v143 = vsel %vm142, %v141, %v139
  %v144 = vadd.s32 %v118, 4294967240
  %v145 = vperm.slane %v76, %v144
  %vm146 = vcmask 523712
  %v147 = vsel %vm146, %v145, %v143
  %v148 = vperm.slane %v79, %v118
  %v149 = vperm.slane %v82, %v120
  %v150 = vsel %vm122, %v149, %v148
  %v151 = vperm.slane %v85, %v124
  %v152 = vsel %vm126, %v151, %v150
  %v153 = vperm.slane %v88, %v128
  %v154 = vsel %vm130, %v153, %v152
  %v155 = vperm.slane %v91, %v132
  %v156 = vsel %vm134, %v155, %v154
  %v157 = vperm.slane %v94, %v136
  %v158 = vsel %vm138, %v157, %v156
  %v159 = vperm.slane %v97, %v140
  %v160 = vsel %vm142, %v159, %v158
  %v161 = vperm.slane %v100, %v144
  %v162 = vsel %vm146, %v161, %v160
  %vm163 = vcmask 1041409
  %v164 = vsel %vm163, %v162, %v147
  %v166 = vadd.f32 %v20, %v164
  %vm167 = vcmask 517120
  %168 = vst.msk [vmem:[#allocation2] sm:$0x3] %vm167, %v166
  // Predicated region
  $region18: #{se_block_2d.2} parent=0 // pred_check
    %p169 = pneg %p14
  $region19: #{se_block_2d.2} parent=0 // pred_check_branch
    %171 = sbr.rel (%p169) target = $region21
  $region20: #{se_block_2d.2} parent=0 // pred_region
    %v172 = vld [vmem:[#allocation2] sm:$0x3]
    %v173 = vmul.f32 %v172, 0.00390625
    %v174 = vld [vmem:[%s1] sm:$0xff]
    %v175 = vld [vmem:[%s1 + $0x8] sm:$0xff]
    %v176 = vld [vmem:[%s1 + $0x10] sm:$0xff]
    %v177 = vld [vmem:[%s1 + $0x18] sm:$0xff]
    %v178 = vld [vmem:[%s1 + $0x20] sm:$0xff]
    %v179 = vld [vmem:[%s1 + $0x28] sm:$0xff]
    %v180 = vld [vmem:[%s1 + $0x30] sm:$0xff]
    %v181 = vld [vmem:[%s1 + $0x38] sm:$0xff]
    %vm182 = vcmask 523264
    %v184 = vsel %vm182, %v173, 0
    %186 = vmatpush.msra.mxu0 0.0
    %187 = vmatpush.msra.mxu0 0.0
    %188 = vmatpush.msra.mxu0 0.0
    %189 = vmatpush.msra.mxu0 0.0
    %190 = vmatpush.msra.mxu0 0.0
    %191 = vmatpush.msra.mxu0 0.0
    %192 = vmatpush.msra.mxu0 0.0
    %193 = vmatpush.msra.mxu0 0.0
    %194 = vmatpush.msra.mxu0 %v181
    %195 = vmatpush.msra.mxu0 %v180
    %196 = vmatpush.msra.mxu0 %v179
    %197 = vmatpush.msra.mxu0 %v178
    %198 = vmatpush.msra.mxu0 %v177
    %199 = vmatpush.msra.mxu0 %v176
    %200 = vmatpush.msra.mxu0 %v175
    %201 = vmatpush.msra.mxu0 %v174
    %202 = vmatmul.f32.gmra.mxu0 %v184
    %v203 = vpop.f32.mrf.mxu0
    %v204 = vadd.f32 0.0, %v203
    %205 = vdwg.mxu0
    %v206 = vmax.f32 %v204, 0.0
    %v207 = vld [vmem:[%s2] sm:$0xf]
    %vm208 = vcmask 31744
    %v210 = vsel %vm208, %v206, 0
    %vm212 = vcmask 1043456
    %v214 = vsel %vm212, %v207, 0
    %216 = vmatpush.msra.mxu0 0.0
    %217 = vmatpush.msra.mxu0 0.0
    %218 = vmatpush.msra.mxu0 0.0
    %219 = vmatpush.msra.mxu0 0.0
    %220 = vmatpush.msra.mxu0 0.0
    %221 = vmatpush.msra.mxu0 0.0
    %222 = vmatpush.msra.mxu0 0.0
    %223 = vmatpush.msra.mxu0 0.0
    %224 = vmatpush.msra.mxu0 0.0
    %225 = vmatpush.msra.mxu0 0.0
    %226 = vmatpush.msra.mxu0 0.0
    %227 = vmatpush.msra.mxu0 0.0
    %228 = vmatpush.msra.mxu0 0.0
    %229 = vmatpush.msra.mxu0 0.0
    %230 = vmatpush.msra.mxu0 0.0
    %231 = vmatpush.msra.mxu0 %v214
    %232 = vmatmul.f32.gmra.mxu0 %v210
    %v233 = vpop.f32.mrf.mxu0
    %v234 = vadd.f32 0.0, %v233
    %235 = vdwg.mxu0
    %v236 = vsub.f32 0.0, %v234
    %v237 = vmul.f32 %v236, 1.442695
    %v238 = vpow.pop %v237
    %v239 = vadd.f32 %v238, 1.0
    %v240 = vrcp.pop %v239
    %v241 = vmul.f32 %v239, %v240
    %v242 = vsub.f32 1.0, %v241
    %v243 = vmul.f32 %v240, %v242
    %v244 = vadd.f32 %v240, %v243
    %vm245 = vweird.f32 %v239
    %vm246 = vweird.f32 %v240
    %vm247 = vmor %vm245, %vm246
    %v248 = vsel %vm247, %v240, %v244
    %v249 = vand.u32 2147483647, %v239
    %vm250 = vcmp.eq.f32.partialorder %v249, 8.507059e+37
    %v251 = vand.u32 %v239, 2147483648
    %v252 = vor.u32 1.1754944e-38, %v251
    %v253 = vsel %vm250, %v252, %v248
    %v254 = vmul.f32 1.0, %v253
    %255 = vst.msk [vmem:[%s3] sm:$0x3] %vm167, %v254
  $region21: #{se_block_2d.2} parent=0 // pred_fallthru
    _
  // Predicated region
  $region22: #{se_block_2d.2} parent=0 // pred_check
    _
  $region23: #{se_block_2d.2} parent=0 // pred_check_branch
    %257 = sbr.rel (0) target = $region25
  $region24: #{se_block_2d.2} parent=0 // pred_region
    _
  $region25: #{se_block_2d.2} parent=0 // pred_fallthru
    _
  // Predicated region
  $region26: #{se_block_2d.2} parent=0 // pred_check
    _
  $region27: #{se_block_2d.2} parent=0 // pred_check_branch
    %259 = sbr.rel (0) target = $region29
  $region28: #{se_block_2d.2} parent=0 // pred_region
    _
  $region29: #{se_block_2d.2} parent=0 // pred_fallthru
    _

// kernel: se_block_2d.3
$region0: #{se_block_2d.3}
  #allocation0 [shape = 'u32[]', space=smem, size = 0x4, offset = 0x4, fixed_abs, tag = 'smem constant byte address 0x4 - core index']
  #allocation1 [shape = 'u32[72,128]{1,0:T(1,128)}', space=vmem, size = 0x9000, scoped, tag = 'internal scratch']
  %s0 = inlined_call_operand.vmem [shape: f32[128,256], index: 0, kind: input, shape index: {}]
  %s1 = inlined_call_operand.vmem [shape: f32[128,1], index: 1, kind: input, shape index: {}]
  %s2 = inlined_call_operand.vmem [shape: f32[128,256], index: 2, kind: output, shape index: {}]
  %s3 = sld [smem:[#allocation0]]
  $region18: #{se_block_2d.3} parent=0
    _
  %s5 = ssub.s32 1, %s3
  %s6 = scalar_select 0, %s5, %s3
  // Predicated region
  $region2: #{se_block_2d.3} parent=0 // pred_check
    _
  $region3: #{se_block_2d.3} parent=0 // pred_check_branch
    %8 = sbr.rel (0) target = $region5
  $region4: #{se_block_2d.3} parent=0 // pred_region
    _
  $region5: #{se_block_2d.3} parent=0 // pred_fallthru
    _
  // Predicated region
  $region6: #{se_block_2d.3} parent=0 // pred_check
    _
  $region7: #{se_block_2d.3} parent=0 // pred_check_branch
    %10 = sbr.rel (0) target = $region9
  $region8: #{se_block_2d.3} parent=0 // pred_region
    _
  $region9: #{se_block_2d.3} parent=0 // pred_fallthru
    _
  %v11 = vld [vmem:[%s0] sm:$0xff]
  %v12 = vld [vmem:[%s0 + $0x8] sm:$0xff]
  %v13 = vld [vmem:[%s0 + $0x10] sm:$0xff]
  %v14 = vld [vmem:[%s0 + $0x18] sm:$0xff]
  %v15 = vld [vmem:[%s0 + $0x20] sm:$0xff]
  %v16 = vld [vmem:[%s0 + $0x28] sm:$0xff]
  %v17 = vld [vmem:[%s0 + $0x30] sm:$0xff]
  %v18 = vld [vmem:[%s0 + $0x38] sm:$0xff]
  %v19 = vld [vmem:[%s0 + $0x40] sm:$0xff]
  %v20 = vld [vmem:[%s0 + $0x48] sm:$0xff]
  %v21 = vld [vmem:[%s0 + $0x50] sm:$0xff]
  %v22 = vld [vmem:[%s0 + $0x58] sm:$0xff]
  %v23 = vld [vmem:[%s0 + $0x60] sm:$0xff]
  %v24 = vld [vmem:[%s0 + $0x68] sm:$0xff]
  %v25 = vld [vmem:[%s0 + $0x70] sm:$0xff]
  %v26 = vld [vmem:[%s0 + $0x78] sm:$0xff]
  %v27 = vld [vmem:[%s0 + $0x80] sm:$0xff]
  %v28 = vld [vmem:[%s0 + $0x88] sm:$0xff]
  %v29 = vld [vmem:[%s0 + $0x90] sm:$0xff]
  %v30 = vld [vmem:[%s0 + $0x98] sm:$0xff]
  %v31 = vld [vmem:[%s0 + $0xa0] sm:$0xff]
  %v32 = vld [vmem:[%s0 + $0xa8] sm:$0xff]
  %v33 = vld [vmem:[%s0 + $0xb0] sm:$0xff]
  %v34 = vld [vmem:[%s0 + $0xb8] sm:$0xff]
  %v35 = vld [vmem:[%s0 + $0xc0] sm:$0xff]
  %v36 = vld [vmem:[%s0 + $0xc8] sm:$0xff]
  %v37 = vld [vmem:[%s0 + $0xd0] sm:$0xff]
  %v38 = vld [vmem:[%s0 + $0xd8] sm:$0xff]
  %v39 = vld [vmem:[%s0 + $0xe0] sm:$0xff]
  %v40 = vld [vmem:[%s0 + $0xe8] sm:$0xff]
  %v41 = vld [vmem:[%s0 + $0xf0] sm:$0xff]
  %v42 = vld [vmem:[%s0 + $0xf8] sm:$0xff]
  %v43 = vld [vmem:[%s1] sm:$0xff]
  %v44 = vld [vmem:[%s1 + $0x8] sm:$0xff]
  %v45 = vld [vmem:[%s1 + $0x10] sm:$0xff]
  %v46 = vld [vmem:[%s1 + $0x18] sm:$0xff]
  %v47 = vld [vmem:[%s1 + $0x20] sm:$0xff]
  %v48 = vld [vmem:[%s1 + $0x28] sm:$0xff]
  %v49 = vld [vmem:[%s1 + $0x30] sm:$0xff]
  %v50 = vld [vmem:[%s1 + $0x38] sm:$0xff]
  %v51 = vld [vmem:[%s1 + $0x40] sm:$0xff]
  %v52 = vld [vmem:[%s1 + $0x48] sm:$0xff]
  %v53 = vld [vmem:[%s1 + $0x50] sm:$0xff]
  %v54 = vld [vmem:[%s1 + $0x58] sm:$0xff]
  %v55 = vld [vmem:[%s1 + $0x60] sm:$0xff]
  %v56 = vld [vmem:[%s1 + $0x68] sm:$0xff]
  %v57 = vld [vmem:[%s1 + $0x70] sm:$0xff]
  %v58 = vld [vmem:[%s1 + $0x78] sm:$0xff]
  %60 = vset.pattern.permute.xlu0 0
  %61 = vperm.xlu0 %60, %v43
  %v62 = vpop.permute.xlu0 %61
  %65 = vset.pattern.permute.xlu0 0
  %66 = vperm.xlu0 %65, %v44
  %v67 = vpop.permute.xlu0 %66
  %70 = vset.pattern.permute.xlu0 0
  %71 = vperm.xlu0 %70, %v45
  %v72 = vpop.permute.xlu0 %71
  %75 = vset.pattern.permute.xlu0 0
  %76 = vperm.xlu0 %75, %v46
  %v77 = vpop.permute.xlu0 %76
  %80 = vset.pattern.permute.xlu0 0
  %81 = vperm.xlu0 %80, %v47
  %v82 = vpop.permute.xlu0 %81
  %85 = vset.pattern.permute.xlu0 0
  %86 = vperm.xlu0 %85, %v48
  %v87 = vpop.permute.xlu0 %86
  %90 = vset.pattern.permute.xlu0 0
  %91 = vperm.xlu0 %90, %v49
  %v92 = vpop.permute.xlu0 %91
  %95 = vset.pattern.permute.xlu0 0
  %96 = vperm.xlu0 %95, %v50
  %v97 = vpop.permute.xlu0 %96
  %100 = vset.pattern.permute.xlu0 0
  %101 = vperm.xlu0 %100, %v51
  %v102 = vpop.permute.xlu0 %101
  %105 = vset.pattern.permute.xlu0 0
  %106 = vperm.xlu0 %105, %v52
  %v107 = vpop.permute.xlu0 %106
  %110 = vset.pattern.permute.xlu0 0
  %111 = vperm.xlu0 %110, %v53
  %v112 = vpop.permute.xlu0 %111
  %115 = vset.pattern.permute.xlu0 0
  %116 = vperm.xlu0 %115, %v54
  %v117 = vpop.permute.xlu0 %116
  %120 = vset.pattern.permute.xlu0 0
  %121 = vperm.xlu0 %120, %v55
  %v122 = vpop.permute.xlu0 %121
  %125 = vset.pattern.permute.xlu0 0
  %126 = vperm.xlu0 %125, %v56
  %v127 = vpop.permute.xlu0 %126
  %130 = vset.pattern.permute.xlu0 0
  %131 = vperm.xlu0 %130, %v57
  %v132 = vpop.permute.xlu0 %131
  %135 = vset.pattern.permute.xlu0 0
  %136 = vperm.xlu0 %135, %v58
  %v137 = vpop.permute.xlu0 %136
  %v139 = vmul.f32 %v11, %v62
  %v140 = vmul.f32 %v12, %v62
  %v141 = vmul.f32 %v13, %v67
  %v142 = vmul.f32 %v14, %v67
  %v143 = vmul.f32 %v15, %v72
  %v144 = vmul.f32 %v16, %v72
  %v145 = vmul.f32 %v17, %v77
  %v146 = vmul.f32 %v18, %v77
  %v147 = vmul.f32 %v19, %v82
  %v148 = vmul.f32 %v20, %v82
  %v149 = vmul.f32 %v21, %v87
  %v150 = vmul.f32 %v22, %v87
  %v151 = vmul.f32 %v23, %v92
  %v152 = vmul.f32 %v24, %v92
  %v153 = vmul.f32 %v25, %v97
  %v154 = vmul.f32 %v26, %v97
  %v155 = vmul.f32 %v27, %v102
  %v156 = vmul.f32 %v28, %v102
  %v157 = vmul.f32 %v29, %v107
  %v158 = vmul.f32 %v30, %v107
  %v159 = vmul.f32 %v31, %v112
  %v160 = vmul.f32 %v32, %v112
  %v161 = vmul.f32 %v33, %v117
  %v162 = vmul.f32 %v34, %v117
  %v163 = vmul.f32 %v35, %v122
  %v164 = vmul.f32 %v36, %v122
  %v165 = vmul.f32 %v37, %v127
  %v166 = vmul.f32 %v38, %v127
  %v167 = vmul.f32 %v39, %v132
  %v168 = vmul.f32 %v40, %v132
  %v169 = vmul.f32 %v41, %v137
  %v170 = vmul.f32 %v42, %v137
  %171 = vst [vmem:[%s2] sm:$0xff] %v139
  %172 = vst [vmem:[%s2 + $0x8] sm:$0xff] %v140
  %173 = vst [vmem:[%s2 + $0x10] sm:$0xff] %v141
  %174 = vst [vmem:[%s2 + $0x18] sm:$0xff] %v142
  %175 = vst [vmem:[%s2 + $0x20] sm:$0xff] %v143
  %176 = vst [vmem:[%s2 + $0x28] sm:$0xff] %v144
  %177 = vst [vmem:[%s2 + $0x30] sm:$0xff] %v145
  %178 = vst [vmem:[%s2 + $0x38] sm:$0xff] %v146
  %179 = vst [vmem:[%s2 + $0x40] sm:$0xff] %v147
  %180 = vst [vmem:[%s2 + $0x48] sm:$0xff] %v148
  %181 = vst [vmem:[%s2 + $0x50] sm:$0xff] %v149
  %182 = vst [vmem:[%s2 + $0x58] sm:$0xff] %v150
  %183 = vst [vmem:[%s2 + $0x60] sm:$0xff] %v151
  %184 = vst [vmem:[%s2 + $0x68] sm:$0xff] %v152
  %185 = vst [vmem:[%s2 + $0x70] sm:$0xff] %v153
  %186 = vst [vmem:[%s2 + $0x78] sm:$0xff] %v154
  %187 = vst [vmem:[%s2 + $0x80] sm:$0xff] %v155
  %188 = vst [vmem:[%s2 + $0x88] sm:$0xff] %v156
  %189 = vst [vmem:[%s2 + $0x90] sm:$0xff] %v157
  %190 = vst [vmem:[%s2 + $0x98] sm:$0xff] %v158
  %191 = vst [vmem:[%s2 + $0xa0] sm:$0xff] %v159
  %192 = vst [vmem:[%s2 + $0xa8] sm:$0xff] %v160
  %193 = vst [vmem:[%s2 + $0xb0] sm:$0xff] %v161
  %194 = vst [vmem:[%s2 + $0xb8] sm:$0xff] %v162
  %195 = vst [vmem:[%s2 + $0xc0] sm:$0xff] %v163
  %196 = vst [vmem:[%s2 + $0xc8] sm:$0xff] %v164
  %197 = vst [vmem:[%s2 + $0xd0] sm:$0xff] %v165
  %198 = vst [vmem:[%s2 + $0xd8] sm:$0xff] %v166
  %199 = vst [vmem:[%s2 + $0xe0] sm:$0xff] %v167
  %200 = vst [vmem:[%s2 + $0xe8] sm:$0xff] %v168
  %201 = vst [vmem:[%s2 + $0xf0] sm:$0xff] %v169
  %202 = vst [vmem:[%s2 + $0xf8] sm:$0xff] %v170
  // Predicated region
  $region10: #{se_block_2d.3} parent=0 // pred_check
    _
  $region11: #{se_block_2d.3} parent=0 // pred_check_branch
    %204 = sbr.rel (0) target = $region13
  $region12: #{se_block_2d.3} parent=0 // pred_region
    _
  $region13: #{se_block_2d.3} parent=0 // pred_fallthru
    _
  // Predicated region
  $region14: #{se_block_2d.3} parent=0 // pred_check
    _
  $region15: #{se_block_2d.3} parent=0 // pred_check_branch
    %206 = sbr.rel (0) target = $region17
  $region16: #{se_block_2d.3} parent=0 // pred_region
    _
  $region17: #{se_block_2d.3} parent=0 // pred_fallthru
    _

</llo_original>
